<compile_context>
chip_gen: v7x
topology: tpu7x:2x2x1
jax: 0.10.0
libtpu: 0.0.40
codegen_flags: <defaults>
</compile_context>

<pallas_src>
import functools
import math

import jax
import jax.numpy as jnp
from jax import lax
from jax.experimental import pallas as pl
from jax.experimental.pallas import tpu as pltpu

_SQRT2 = math.sqrt(2.0)
_SELU_ALPHA = 1.6732632423543772
_SELU_SCALE = 1.0507009873554805

# VMEM budgets (generation-safe: v7x has 64 MiB physical / 32 MiB scoped).
_VMEM_LIMIT = 32 * 1024 * 1024
# Per-block byte budget for softmax/GLU paths: in + out double-buffered ->
# ~4x this in flight (<= 16 MiB).
_BLOCK_BYTE_BUDGET = 4 * 1024 * 1024
# Elementwise blocks target ~2 MiB (>= ~85% of measured HBM roofline,
# 4 buffers in flight = 8 MiB -> safe on v5e/v6e/v7x).
_ELTWISE_BLOCK_BYTES = 2 * 1024 * 1024

_CP_1D = pltpu.CompilerParams(
    dimension_semantics=("parallel",), vmem_limit_bytes=_VMEM_LIMIT
)
_CP_2D = pltpu.CompilerParams(
    dimension_semantics=("parallel", "parallel"), vmem_limit_bytes=_VMEM_LIMIT
)

# Pure min/max/mul/select ops: safe to compute in the native dtype (keeps bf16
# packed); transcendental ops upcast to f32.
_NATIVE_DTYPE_OK = {"relu", "relu6", "leakyrelu", "hardswish", "hardtanh", "prelu"}


# ------------------------------ kernel math ------------------------------ #
def _stable_sigmoid(x):
    """Numerically stable logistic with EXACT division (bit-accurate enough
    to match framework sigmoid within float32 rounding)."""
    e = jnp.exp(-jnp.abs(x))
    pos = 1.0 / (1.0 + e)          # x >= 0 branch: 1 / (1 + e^-x)
    neg = e * pos                  # x <  0 branch: e^x / (1 + e^x)
    return jnp.where(x >= 0, pos, neg)


def _eltwise_math(x, act_type, kw):
    if act_type == "relu":
        return jnp.maximum(x, 0.0)
    if act_type == "relu6":
        return jnp.clip(x, 0.0, 6.0)
    if act_type == "leakyrelu":
        slope = kw.get("negative_slope", 0.01)
        return jnp.where(x >= 0, x, slope * x)
    if act_type == "prelu":
        # nn.PReLU(): num_parameters=1, init=0.25 — deterministic scalar init.
        # TODO(synk): learned / per-channel PReLU weights not implemented.
        a = kw.get("init", 0.25)
        return jnp.where(x >= 0, x, a * x)
    if act_type == "celu":
        alpha = kw.get("alpha", 1.0)
        return jnp.maximum(x, 0.0) + jnp.minimum(0.0, alpha * jnp.expm1(x / alpha))
    if act_type == "elu":
        alpha = kw.get("alpha", 1.0)
        return jnp.where(x > 0, x, alpha * jnp.expm1(jnp.minimum(x, 0.0)))
    if act_type == "hardswish":
        return x * jnp.clip(x + 3.0, 0.0, 6.0) * (1.0 / 6.0)
    if act_type == "hardtanh":
        lo = kw.get("min_val", -1.0)
        hi = kw.get("max_val", 1.0)
        return jnp.clip(x, lo, hi)
    if act_type == "gelu":
        # PyTorch default GELU (approximate='none'): exact erf form.
        return 0.5 * x * (1.0 + lax.erf(x / _SQRT2))
    if act_type == "selu":
        return _SELU_SCALE * (
            jnp.maximum(x, 0.0)
            + jnp.minimum(0.0, _SELU_ALPHA * jnp.expm1(jnp.minimum(x, 0.0)))
        )
    if act_type == "silu":
        return x * _stable_sigmoid(x)
    if act_type == "sigmoid":
        return _stable_sigmoid(x)
    if act_type == "tanh":
        return jnp.tanh(x)
    if act_type == "none":
        return x
    raise NotImplementedError(f"Unsupport activation type: {act_type}")


def _make_eltwise_kernel(act_type, kw):
    native = act_type in _NATIVE_DTYPE_OK

    def kernel(x_ref, o_ref):
        x = x_ref[...]
        if not native:
            x = x.astype(jnp.float32)
        o_ref[...] = _eltwise_math(x, act_type, kw).astype(o_ref.dtype)

    return kernel


def _softmax_lane_kernel(g, x_ref, o_ref):
    """Softmax over the last axis; g independent length-d rows packed per
    lane row (g*d == lane width) so the output store stays lane-dense."""
    x = x_ref[...].astype(jnp.float32)
    if g > 1:
        tr, gd = x.shape
        x = x.reshape(tr, g, gd // g)
    m = jnp.max(x, axis=-1, keepdims=True)
    e = jnp.exp(x - m)
    s = jnp.sum(e, axis=-1, keepdims=True)
    y = e / s
    if g > 1:
        y = y.reshape(x_ref.shape)
    o_ref[...] = y.astype(o_ref.dtype)


def _softmax_sublane_kernel(x_ref, o_ref):
    # Softmax over axis -2 (sublanes); lane axis stays dense & independent.
    x = x_ref[...].astype(jnp.float32)
    m = jnp.max(x, axis=-2, keepdims=True)
    e = jnp.exp(x - m)
    s = jnp.sum(e, axis=-2, keepdims=True)
    o_ref[...] = (e / s).astype(o_ref.dtype)


def _glu_pair_kernel(a_ref, b_ref, o_ref):
    # Halves delivered as separate BlockSpec'd inputs: no in-kernel slicing.
    a = a_ref[...].astype(jnp.float32)
    b = b_ref[...].astype(jnp.float32)
    o_ref[...] = (a * _stable_sigmoid(b)).astype(o_ref.dtype)


def _glu_slice_lane_kernel(x_ref, o_ref):
    half = o_ref.shape[-1]
    x = x_ref[...].astype(jnp.float32)
    o_ref[...] = (x[:, :half] * _stable_sigmoid(x[:, half:])).astype(o_ref.dtype)


def _glu_slice_sublane_kernel(x_ref, o_ref):
    half = o_ref.shape[-2]
    x = x_ref[...].astype(jnp.float32)
    o_ref[...] = (x[:, :half, :] * _stable_sigmoid(x[:, half:, :])).astype(o_ref.dtype)


# ------------------------------ tiling utils ------------------------------ #
def _prod(xs):
    p = 1
    for v in xs:
        p *= int(v)
    return p


def _row_tile(rows, row_bytes, budget=_BLOCK_BYTE_BUDGET):
    """Byte-budgeted sublane tile for a (rows, cols) lane-dense launch."""
    if rows <= 8:
        return rows  # block == full array extent (always legal)
    tr = max(1, budget // max(row_bytes, 1))
    tr = max(8, (tr // 8) * 8)
    return min(tr, rows)


def _sublane_tiles(pre, d, post, itemsize=4):
    """Byte-budgeted (bp, d, pt) block for the (pre, d, post) layout."""
    if post % 128 == 0:
        pt = max(128, (_BLOCK_BYTE_BUDGET // max(d * itemsize, 1) // 128) * 128)
        pt = min(post, pt)
    else:
        pt = post  # ragged lane extent must be taken whole (see pad path below)
    bp = max(1, _BLOCK_BYTE_BUDGET // max(d * pt * itemsize, 1))
    bp = min(bp, pre)
    return bp, pt


def _maybe_pad_post(x3, d, post):
    """v7x VMEM safety: if the lane extent is ragged AND a full-post block
    would blow the byte budget, pad post to a multiple of 128 (cheap compared
    to a VMEM OOM / single-buffered pipeline)."""
    if post % 128 == 0 or d * post * 4 <= _BLOCK_BYTE_BUDGET:
        return x3, post
    post_p = ((post + 127) // 128) * 128
    x3 = jnp.pad(x3, ((0, 0), (0, 0), (0, post_p - post)))
    return x3, post_p


# ------------------------------ dispatchers ------------------------------ #
def _eltwise_forward(x, act_type, kw):
    """Lane-dense, row-tiled elementwise launch (no pad/slice HBM copies)."""
    orig_shape = x.shape
    total = int(x.size)
    if total == 0:
        return x
    itemsize = jnp.dtype(x.dtype).itemsize

    cols = None
    for c in (512, 256, 128):
        if total % c == 0:
            cols = c
            break

    if cols is not None:
        rows = total // cols
        x2d = x.reshape(rows, cols)
        tr = _row_tile(rows, cols * itemsize, _ELTWISE_BLOCK_BYTES)
        grid = (pl.cdiv(rows, tr),)
        y2d = pl.pallas_call(
            _make_eltwise_kernel(act_type, kw),
            out_shape=jax.ShapeDtypeStruct((rows, cols), x.dtype),
            grid=grid,
            in_specs=[pl.BlockSpec((tr, cols), lambda i: (i, 0))],
            out_specs=pl.BlockSpec((tr, cols), lambda i: (i, 0)),
            compiler_params=_CP_1D,
        )(x2d)
        return y2d.reshape(orig_shape)

    if total * itemsize <= _BLOCK_BYTE_BUDGET:
        # Not a multiple of 128 but small: single full-array block, no copies.
        x2d = x.reshape(1, total)
        y2d = pl.pallas_call(
            _make_eltwise_kernel(act_type, kw),
            out_shape=jax.ShapeDtypeStruct((1, total), x.dtype),
            grid=(1,),
            in_specs=[pl.BlockSpec((1, total), lambda i: (0, 0))],
            out_specs=pl.BlockSpec((1, total), lambda i: (0, 0)),
            compiler_params=_CP_1D,
        )(x2d)
        return y2d.reshape(orig_shape)

    # TODO(synk): rare fallback (large tensor, size not a multiple of 128):
    # pad + slice round trip; could be split into a divisible prefix + tail.
    cols = 512
    rows = -(-total // cols)
    rows_padded = ((rows + 7) // 8) * 8
    flat = jnp.pad(x.reshape(-1), (0, rows_padded * cols - total))
    x2d = flat.reshape(rows_padded, cols)
    tr = _row_tile(rows_padded, cols * itemsize, _ELTWISE_BLOCK_BYTES)
    y2d = pl.pallas_call(
        _make_eltwise_kernel(act_type, kw),
        out_shape=jax.ShapeDtypeStruct((rows_padded, cols), x.dtype),
        grid=(pl.cdiv(rows_padded, tr),),
        in_specs=[pl.BlockSpec((tr, cols), lambda i: (i, 0))],
        out_specs=pl.BlockSpec((tr, cols), lambda i: (i, 0)),
        compiler_params=_CP_1D,
    )(x2d)
    return y2d.reshape(-1)[:total].reshape(orig_shape)


def _softmax_forward(x, dim):
    shape = x.shape
    dim = dim % x.ndim
    d = int(shape[dim])
    pre = _prod(shape[:dim])
    post = _prod(shape[dim + 1:])

    if post == 1:
        # Reduction over the last (lane) axis.  For small d, pack g rows per
        # lane row so vector stores are full 128 lanes (not masked).
        g = 1
        if d < 128 and 128 % d == 0 and pre % (128 // d) == 0:
            g = 128 // d
        rows, cols = pre // g, g * d
        x2 = x.reshape(rows, cols)
        tr = _row_tile(rows, cols * 4)
        grid = (pl.cdiv(rows, tr),)
        y2 = pl.pallas_call(
            functools.partial(_softmax_lane_kernel, g),
            out_shape=jax.ShapeDtypeStruct((rows, cols), x.dtype),
            grid=grid,
            in_specs=[pl.BlockSpec((tr, cols), lambda i: (i, 0))],
            out_specs=pl.BlockSpec((tr, cols), lambda i: (i, 0)),
            compiler_params=_CP_1D,
        )(x2)
        return y2.reshape(shape)

    # Reduction axis on sublanes, dense lane axis = trailing dims (no transpose).
    x3 = x.reshape(pre, d, post)
    x3, post_p = _maybe_pad_post(x3, d, post)
    bp, pt = _sublane_tiles(pre, d, post_p)
    grid = (pl.cdiv(pre, bp), pl.cdiv(post_p, pt))
    y3 = pl.pallas_call(
        _softmax_sublane_kernel,
        out_shape=jax.ShapeDtypeStruct((pre, d, post_p), x.dtype),
        grid=grid,
        in_specs=[pl.BlockSpec((bp, d, pt), lambda i, j: (i, 0, j))],
        out_specs=pl.BlockSpec((bp, d, pt), lambda i, j: (i, 0, j)),
        compiler_params=_CP_2D,
    )(x3)
    if post_p != post:
        y3 = y3[:, :, :post]
    return y3.reshape(shape)


def _glu_forward(x, dim):
    shape = x.shape
    dim = dim % x.ndim
    d = int(shape[dim])
    if d % 2 != 0:
        raise ValueError("Halving dimension must be even, but dimension "
                         f"{dim} is size {d}")
    half = d // 2
    pre = _prod(shape[:dim])
    post = _prod(shape[dim + 1:])
    out_shape_full = shape[:dim] + (half,) + shape[dim + 1:]

    if post == 1:
        x2 = x.reshape(pre, d)
        tr = _row_tile(pre, d * 4)
        grid = (pl.cdiv(pre, tr),)
        if half % 128 == 0:
            # Two lane-aligned halves as separate inputs: no in-kernel slicing.
            y2 = pl.pallas_call(
                _glu_pair_kernel,
                out_shape=jax.ShapeDtypeStruct((pre, half), x.dtype),
                grid=grid,
                in_specs=[pl.BlockSpec((tr, half), lambda i: (i, 0)),
                          pl.BlockSpec((tr, half), lambda i: (i, 1))],
                out_specs=pl.BlockSpec((tr, half), lambda i: (i, 0)),
                compiler_params=_CP_1D,
            )(x2, x2)
        else:
            y2 = pl.pallas_call(
                _glu_slice_lane_kernel,
                out_shape=jax.ShapeDtypeStruct((pre, half), x.dtype),
                grid=grid,
                in_specs=[pl.BlockSpec((tr, d), lambda i: (i, 0))],
                out_specs=pl.BlockSpec((tr, half), lambda i: (i, 0)),
                compiler_params=_CP_1D,
            )(x2)
        return y2.reshape(out_shape_full)

    # Split axis on sublanes; lane axis stays dense -> no HBM transposes.
    x3 = x.reshape(pre, d, post)
    x3, post_p = _maybe_pad_post(x3, d, post)
    bp, pt = _sublane_tiles(pre, d, post_p)
    grid = (pl.cdiv(pre, bp), pl.cdiv(post_p, pt))
    if half % 8 == 0:
        # Sublane-aligned halves as two inputs (block index 1 on split axis).
        y3 = pl.pallas_call(
            _glu_pair_kernel,
            out_shape=jax.ShapeDtypeStruct((pre, half, post_p), x.dtype),
            grid=grid,
            in_specs=[pl.BlockSpec((bp, half, pt), lambda i, j: (i, 0, j)),
                      pl.BlockSpec((bp, half, pt), lambda i, j: (i, 1, j))],
            out_specs=pl.BlockSpec((bp, half, pt), lambda i, j: (i, 0, j)),
            compiler_params=_CP_2D,
        )(x3, x3)
    else:
        y3 = pl.pallas_call(
            _glu_slice_sublane_kernel,
            out_shape=jax.ShapeDtypeStruct((pre, half, post_p), x.dtype),
            grid=grid,
            in_specs=[pl.BlockSpec((bp, d, pt), lambda i, j: (i, 0, j))],
            out_specs=pl.BlockSpec((bp, half, pt), lambda i, j: (i, 0, j)),
            compiler_params=_CP_2D,
        )(x3)
    if post_p != post:
        y3 = y3[:, :, :post]
    return y3.reshape(out_shape_full)


def _legacy_softmax_dim(ndim):
    # Mirrors torch.nn.functional._get_softmax_dim (dim=None legacy behavior).
    return 0 if ndim in (0, 1, 3) else 1


def activation_forward(x, act_type, **kwargs):
    """Equivalent of Activation(act_type, **kwargs)(x)."""
    act_type = act_type.lower()

    if act_type == "none":
        return x  # identity: no HBM round-trip

    if act_type == "softmax":
        dim = kwargs.get("dim", None)
        if dim is None:
            dim = _legacy_softmax_dim(x.ndim)
        return _softmax_forward(x, dim)

    if act_type == "glu":
        return _glu_forward(x, kwargs.get("dim", -1))

    # plain elementwise activations
    return _eltwise_forward(x, act_type, kwargs)


# ---------------------------------- demo ---------------------------------- #
if __name__ == "__main__":
    key = jax.random.PRNGKey(0)
    x = jax.random.normal(key, (2, 4, 16, 16), dtype=jnp.float32)  # NCHW

    outs = {}
    for act in ["relu", "relu6", "leakyrelu", "prelu", "celu", "elu",
                "hardswish", "hardtanh", "gelu", "selu", "silu",
                "sigmoid", "tanh", "none"]:
        outs[act] = activation_forward(x, act)
    outs["softmax_c"] = activation_forward(x, "softmax", dim=1)
    outs["softmax_w"] = activation_forward(x, "softmax", dim=-1)
    outs["glu_c"] = activation_forward(x, "glu", dim=1)
    outs["glu_w"] = activation_forward(x, "glu", dim=-1)

    for v in outs.values():
        jax.block_until_ready(v)

    # sanity checks against JAX references (exact math paths -> tight tol)
    assert jnp.allclose(outs["relu"], jnp.maximum(x, 0.0), atol=1e-6)
    assert jnp.allclose(outs["relu6"], jnp.clip(x, 0.0, 6.0), atol=1e-6)
    assert jnp.allclose(outs["leakyrelu"], jnp.where(x >= 0, x, 0.01 * x), atol=1e-6)
    assert jnp.allclose(outs["prelu"], jnp.where(x >= 0, x, 0.25 * x), atol=1e-6)
    assert jnp.allclose(outs["hardswish"],
                        x * jnp.clip(x + 3.0, 0.0, 6.0) / 6.0, atol=1e-6)
    assert jnp.allclose(outs["gelu"], jax.nn.gelu(x, approximate=False), atol=1e-5)
    assert jnp.allclose(outs["tanh"], jnp.tanh(x), atol=1e-5)
    assert jnp.allclose(outs["elu"], jax.nn.elu(x), atol=1e-5)
    assert jnp.allclose(outs["celu"], jax.nn.celu(x), atol=1e-5)
    assert jnp.allclose(outs["selu"], jax.nn.selu(x), atol=1e-5)
    assert jnp.allclose(outs["silu"], jax.nn.silu(x), atol=1e-5)
    assert jnp.allclose(outs["sigmoid"], jax.nn.sigmoid(x), atol=1e-5)
    assert jnp.allclose(outs["softmax_c"], jax.nn.softmax(x, axis=1), atol=1e-5)
    assert jnp.allclose(outs["softmax_w"], jax.nn.softmax(x, axis=-1), atol=1e-5)
    glu_a, glu_b = jnp.split(x, 2, axis=1)
    assert jnp.allclose(outs["glu_c"], glu_a * jax.nn.sigmoid(glu_b), atol=1e-5)
    glu_aw, glu_bw = jnp.split(x, 2, axis=-1)
    assert jnp.allclose(outs["glu_w"], glu_aw * jax.nn.sigmoid(glu_bw), atol=1e-5)
    assert outs["glu_c"].shape == (2, 2, 16, 16)
    assert outs["glu_w"].shape == (2, 4, 16, 8)
    assert outs["none"].shape == x.shape

    print("KERNEL_OK")
</pallas_src>

<mosaic_0001>
module attributes {stable_mosaic.version = 11 : i64} {
  func.func @kernel(%arg0: i32, %arg1: memref<4x512xf32, #tpu.memory_space<vmem>>, %arg2: memref<4x512xf32, #tpu.memory_space<vmem>>) attributes {dimension_semantics = [#tpu.dimension_semantics<parallel>], iteration_bounds = array<i64: 1>, scalar_prefetch = 0 : i64, scratch_operands = 0 : i64, tpu.core_type = #tpu.core_type<tc>, window_params = [{transform_indices = @transform_0, window_bounds = array<i64: 4, 512>}, {transform_indices = @transform_1, window_bounds = array<i64: 4, 512>}]} {
    %c0 = arith.constant 0 : index
    %c0_0 = arith.constant 0 : index
    %0 = vector.load %arg1[%c0, %c0_0] : memref<4x512xf32, #tpu.memory_space<vmem>>, vector<4x512xf32>
    %cst = arith.constant 0.000000e+00 : f32
    %1 = vector.broadcast %cst : f32 to vector<4x512xf32>
    %2 = arith.maximumf %0, %1 : vector<4x512xf32>
    %c0_1 = arith.constant 0 : index
    %c0_2 = arith.constant 0 : index
    %3 = vector.load %arg2[%c0_1, %c0_2] : memref<4x512xf32, #tpu.memory_space<vmem>>, vector<4x512xf32>
    tpu.vector_store %arg2[%c0_1, %c0_2], %2 {strides = array<i32>} : memref<4x512xf32, #tpu.memory_space<vmem>>, vector<4x512xf32>,
    return
  }
  func.func @transform_0(%arg0: i32) -> (i32, i32) {
    %c0_i32 = arith.constant 0 : i32
    %c0_i32_0 = arith.constant 0 : i32
    return %arg0, %c0_i32 : i32, i32
  }
  func.func @transform_1(%arg0: i32) -> (i32, i32) {
    %c0_i32 = arith.constant 0 : i32
    %c0_i32_0 = arith.constant 0 : i32
    return %arg0, %c0_i32 : i32, i32
  }
}

</mosaic_0001>

<llo_original>
// kernel: tpu_custom_call.1
$region0: #{tpu_custom_call.1}
  #allocation0 [shape = 'u32[]', space=smem, size = 0x4, offset = 0x4, fixed_abs, tag = 'smem constant byte address 0x4 - core index']
  #allocation1 [shape = 'u32[144,128]{1,0:T(1,128)}', space=vmem, size = 0x12000, scoped, tag = 'internal scratch']
  %s0 = inlined_call_operand.hbm [shape: f32[4,512], index: 0, kind: input, shape index: {}]
  %s1 = inlined_call_operand.hbm [shape: f32[4,512], index: 1, kind: output, shape index: {}]
  %s2 = sld [smem:[#allocation0]]
  $region18: #{tpu_custom_call.1} parent=0
    _
  %s4 = ssub.s32 1, %s2
  %s5 = scalar_select 0, %s4, %s2
  $region1: #{tpu_custom_call.1} parent=0
    #allocation2 [shape = 'u8[8192]{0}', space=vmem, size = 0x2000, scoped, tag = 'input window, operand 0, single buffered']
    #allocation3 [shape = 's32[1]{0}', space=sflag, size = 0x4, scoped, tag = 'scoped memory for tpu_custom_call.1']
    #allocation4 [shape = 's32[1]{0}', space=sflag, size = 0x4, scoped, tag = 'scoped memory for tpu_custom_call.1']
    #allocation5 [shape = 'u8[8192]{0}', space=vmem, size = 0x2000, scoped, tag = 'output window, operand 0, single buffered']
    %6 = vsyncpa [#allocation3], 0
    %7 = vsyncpa [#allocation4], 0
    // Predicated region
    $region2: #{tpu_custom_call.1} parent=1 // pred_check
      _
    $region3: #{tpu_custom_call.1} parent=1 // pred_check_branch
      %9 = sbr.rel (0) target = $region5
    $region4: #{tpu_custom_call.1} parent=1 // pred_region
      %s11 = ssub.s32 256, 256
      %12 = vsyncadd [#allocation3], %s11
      %s14 = sshll.u32 [#allocation2], 4
      %s15 = int_to_ptr.vmem [resolvable:$true] %s14
      %17 = dma.hbm_to_vmem [thread:$0]  %s0, 256, %s15, [#allocation3]
    $region5: #{tpu_custom_call.1} parent=1 // pred_fallthru
      _
    // Predicated region
    $region6: #{tpu_custom_call.1} parent=1 // pred_check
      _
    $region7: #{tpu_custom_call.1} parent=1 // pred_check_branch
      %19 = sbr.rel (0) target = $region9
    $region8: #{tpu_custom_call.1} parent=1 // pred_region
      %20 = dma.done [#allocation3], 256
    $region9: #{tpu_custom_call.1} parent=1 // pred_fallthru
      _
    %v21 = vld [vmem:[#allocation2] sm:$0xff]
    %v22 = vld [vmem:[#allocation2 + $0x8] sm:$0xff]
    %v23 = vmax.f32 %v21, 0.0
    %v24 = vmax.f32 %v22, 0.0
    %25 = vst [vmem:[#allocation5] sm:$0xff] %v23
    %26 = vst [vmem:[#allocation5 + $0x8] sm:$0xff] %v24
    // Predicated region
    $region10: #{tpu_custom_call.1} parent=1 // pred_check
      _
    $region11: #{tpu_custom_call.1} parent=1 // pred_check_branch
      %28 = sbr.rel (0) target = $region13
    $region12: #{tpu_custom_call.1} parent=1 // pred_region
      %s30 = ssub.s32 256, 256
      %31 = vsyncadd [#allocation4], %s30
      %s33 = sshll.u32 [#allocation5], 4
      %s34 = int_to_ptr.vmem [resolvable:$true] %s33
      %36 = dma.vmem_to_hbm [thread:$0]  %s34, 256, %s1, [#allocation4]
    $region13: #{tpu_custom_call.1} parent=1 // pred_fallthru
      _
    // Predicated region
    $region14: #{tpu_custom_call.1} parent=1 // pred_check
      _
    $region15: #{tpu_custom_call.1} parent=1 // pred_check_branch
      %38 = sbr.rel (0) target = $region17
    $region16: #{tpu_custom_call.1} parent=1 // pred_region
      %39 = dma.done [#allocation4], 256
    $region17: #{tpu_custom_call.1} parent=1 // pred_fallthru
      _
    %40 = vsyncpa [#allocation3], 1
    %41 = vsyncpa [#allocation4], 1

</llo_original>
